<compile_context>
chip_gen: v6e
topology: v6e:2x2x1
jax: 0.10.0
libtpu: 0.0.40
codegen_flags: <defaults>
</compile_context>

<pallas_src>
import functools

import jax
import jax.numpy as jnp
from jax.experimental import pallas as pl
from jax.experimental.pallas import tpu as pltpu

LANE = 128
SUBLANE = 8


def _round_up(n: int, m: int) -> int:
    return ((n + m - 1) // m) * m


# ----------------------------------------------------------------------------- kernel
def cwm_kernel(x_ref, w_ref, b_ref, o_ref):
    """Fused MLP forward on one batch tile.

    x_ref : (tm, in_size)        bf16   activations at true width (no lane pad)
    w_ref : (L, Dpad, Dpad)      bf16   layer l holds W_l^T in [:in_l, :out_l], zeros elsewhere
    b_ref : (L, 1, Dpad)         f32    layer l bias in [:out_l], zeros elsewhere
    o_ref : (tm, out_size)       f32

    ReLU after every layer except the last (matches CWMnet.forward).
    Zero-padded weight columns + zero bias stay zero through ReLU, and padded
    activation lanes only ever hit zero weight rows — padding is exact.
    """
    num_layers = w_ref.shape[0]
    d_pad = w_ref.shape[-1]
    out_size = o_ref.shape[-1]

    h = x_ref[...]                                        # (tm, in_size) bf16
    for l in range(num_layers):
        w = w_ref[l]                                      # (Dpad, Dpad) bf16
        k = h.shape[-1]
        wk = w if k == d_pad else w[:k, :]                # first layer contracts over in_size
        h = jnp.dot(h, wk, preferred_element_type=jnp.float32) + b_ref[l]   # f32 acc + f32 bias
        if l < num_layers - 1:
            h = jnp.maximum(h, 0.0).astype(jnp.bfloat16)  # ReLU in f32, carry bf16 forward
    o_ref[...] = h if out_size == h.shape[-1] else h[:, :out_size]


# ----------------------------------------------------------------------------- one-time prep
def prep_cwm_params(params):
    """Hoisted layout glue: transpose, lane-pad to 128, pack weights & biases into slabs.

    params: list of (W, b) in PyTorch layout, W: (out, in), b: (out,).
    Call once; reuse the returned dict for every forward call.
    """
    dims = [params[0][0].shape[1]] + [w.shape[0] for (w, _) in params]
    d_pad = _round_up(max(dims), LANE)
    num_layers = len(params)

    w_slab = jnp.zeros((num_layers, d_pad, d_pad), jnp.bfloat16)
    b_slab = jnp.zeros((num_layers, 1, d_pad), jnp.float32)
    for l, (w, b) in enumerate(params):
        out_d, in_d = w.shape
        wt = jnp.asarray(w, jnp.float32).T.astype(jnp.bfloat16)       # (in, out)
        w_slab = w_slab.at[l, :in_d, :out_d].set(wt)
        b_slab = b_slab.at[l, 0, :out_d].set(jnp.asarray(b, jnp.float32))

    return dict(
        w_slab=w_slab,
        b_slab=b_slab,
        d_pad=d_pad,
        in_size=params[0][0].shape[1],
        out_size=params[-1][0].shape[0],
        num_layers=num_layers,
    )


# ----------------------------------------------------------------------------- forward
@functools.partial(jax.jit, static_argnames=("out_size",))
def _cwm_forward_impl(x, w_slab, b_slab, *, out_size):
    B, in_size = x.shape
    num_layers, d_pad, _ = w_slab.shape

    # Batch tiling: multiple of 8 sublanes, tile capped at 2048; when the padded
    # batch is >= 16 rows keep at least 2 tiles so the "parallel" batch axis can
    # shard across both TensorCores on v7x (no-op on single-TC v5e/v6e).
    b8 = _round_up(max(B, 1), SUBLANE)
    if b8 >= 2 * SUBLANE:
        tm = min(2048, _round_up((b8 + 1) // 2, SUBLANE))
    else:
        tm = b8
    b_pad = _round_up(b8, tm)

    # bf16 activations at true width; row-pad only when the tile doesn't divide B.
    xb = x.astype(jnp.bfloat16)
    if b_pad != B:
        xb = jnp.pad(xb, ((0, b_pad - B), (0, 0)))

    const3 = lambda i: (0, 0, 0)
    out = pl.pallas_call(
        cwm_kernel,
        out_shape=jax.ShapeDtypeStruct((b_pad, out_size), jnp.float32),
        grid=(b_pad // tm,),
        in_specs=[
            # activations: tiled over batch, true (unpadded) lane width
            pl.BlockSpec((tm, in_size), lambda i: (i, 0)),
            # weights/biases: grid-invariant -> resident in VMEM, single-buffered
            pl.BlockSpec((num_layers, d_pad, d_pad), const3,
                         pipeline_mode=pl.Buffered(1)),
            pl.BlockSpec((num_layers, 1, d_pad), const3,
                         pipeline_mode=pl.Buffered(1)),
        ],
        out_specs=pl.BlockSpec((tm, out_size), lambda i: (i, 0)),
        compiler_params=pltpu.CompilerParams(
            dimension_semantics=("parallel",),   # shards batch tiles across TCs on v7x
        ),
    )(xb, w_slab, b_slab)

    return out if b_pad == B else out[:B]


def cwm_forward(x, prepped):
    """CWMnet forward. `prepped` is the output of prep_cwm_params (cached once)."""
    return _cwm_forward_impl(x, prepped["w_slab"], prepped["b_slab"],
                             out_size=prepped["out_size"])


# ----------------------------------------------------------------------------- init + reference
def init_cwm_params(key, input_size, hidden_dims, output_size):
    """Mimics torch.nn.Linear default init: U(-1/sqrt(fan_in), 1/sqrt(fan_in))."""
    dims = [input_size] + list(hidden_dims) + [output_size]
    params = []
    for i in range(len(dims) - 1):
        fan_in, fan_out = dims[i], dims[i + 1]
        key, kw, kb = jax.random.split(key, 3)
        bound = 1.0 / (fan_in ** 0.5)
        w = jax.random.uniform(kw, (fan_out, fan_in), jnp.float32, -bound, bound)
        b = jax.random.uniform(kb, (fan_out,), jnp.float32, -bound, bound)
        params.append((w, b))
    return params


def cwm_reference(x, params):
    """Pure-JAX f32 reference of CWMnet.forward."""
    h = x
    for i, (w, b) in enumerate(params):
        h = h @ w.T + b
        if i < len(params) - 1:
            h = jnp.maximum(h, 0.0)
    return h


if __name__ == "__main__":
    # CWMnet(input_size=32, hidden_dims=[64, 32], output_size=16), batch=8
    input_size = 32
    hidden_dims = [64, 32]
    output_size = 16
    batch = 8

    key = jax.random.PRNGKey(0)
    key, kx = jax.random.split(key)
    x = jax.random.normal(kx, (batch, input_size), jnp.float32)

    params = init_cwm_params(key, input_size, hidden_dims, output_size)
    prepped = prep_cwm_params(params)          # one-time prep, out of the hot path

    out = cwm_forward(x, prepped)
    out = jax.block_until_ready(out)

    ref = cwm_reference(x, params)
    assert out.shape == (batch, output_size)
    # bf16 MXU inputs/activations -> loosen tolerance vs f32 reference.
    # (If tighter accuracy is needed, keep first/last layer weights in f32 — the
    # kernel is memory-bound so the extra bytes are cheap.)
    assert jnp.allclose(out, ref, atol=5e-2, rtol=5e-2), "Pallas output mismatch vs reference"

    print("KERNEL_OK")
</pallas_src>

<mosaic_0001>
module attributes {stable_mosaic.version = 11 : i64} {
  func.func @cwm_kernel(%arg0: i32, %arg1: memref<8x32xbf16, #tpu.memory_space<vmem>>, %arg2: memref<3x128x128xbf16, #tpu.memory_space<vmem>>, %arg3: memref<3x1x128xf32, #tpu.memory_space<vmem>>, %arg4: memref<8x16xf32, #tpu.memory_space<vmem>>) attributes {dimension_semantics = [#tpu.dimension_semantics<parallel>], iteration_bounds = array<i64: 1>, scalar_prefetch = 0 : i64, scratch_operands = 0 : i64, tpu.core_type = #tpu.core_type<tc>, window_params = [{transform_indices = @transform_0, window_bounds = array<i64: 8, 32>}, {pipeline_mode = #tpu.pipeline_mode<synchronous>, transform_indices = @transform_1, window_bounds = array<i64: 3, 128, 128>}, {pipeline_mode = #tpu.pipeline_mode<synchronous>, transform_indices = @transform_2, window_bounds = array<i64: 3, 1, 128>}, {transform_indices = @transform_3, window_bounds = array<i64: 8, 16>}]} {
    %c0 = arith.constant 0 : index
    %c0_0 = arith.constant 0 : index
    %0 = vector.load %arg1[%c0, %c0_0] : memref<8x32xbf16, #tpu.memory_space<vmem>>, vector<8x32xbf16>
    %c0_1 = arith.constant 0 : index
    %c0_2 = arith.constant 0 : index
    %c0_3 = arith.constant 0 : index
    %1 = vector.load %arg2[%c0_1, %c0_2, %c0_3] : memref<3x128x128xbf16, #tpu.memory_space<vmem>>, vector<1x128x128xbf16>
    %2 = vector.shape_cast %1 : vector<1x128x128xbf16> to vector<128x128xbf16>
    %3 = vector.extract_strided_slice %2 {offsets = [0, 0], sizes = [32, 128], strides = [1, 1]} : vector<128x128xbf16> to vector<32x128xbf16>
    %cst = arith.constant dense<0.000000e+00> : vector<8x128xf32>
    %4 = tpu.matmul %0, %3, %cst {dimension_numbers = #tpu.dot_dimension_numbers<[1], [0], [0], [1], [0, 0, 1, 1], [], []>} : vector<8x32xbf16>, vector<32x128xbf16>, vector<8x128xf32> -> vector<8x128xf32>
    %c0_4 = arith.constant 0 : index
    %c0_5 = arith.constant 0 : index
    %c0_6 = arith.constant 0 : index
    %5 = vector.load %arg3[%c0_4, %c0_5, %c0_6] : memref<3x1x128xf32, #tpu.memory_space<vmem>>, vector<1x1x128xf32>
    %6 = vector.shape_cast %5 : vector<1x1x128xf32> to vector<1x128xf32>
    %7 = vector.broadcast %6 : vector<1x128xf32> to vector<8x128xf32>
    %8 = arith.addf %4, %7 : vector<8x128xf32>
    %cst_7 = arith.constant 0.000000e+00 : f32
    %9 = vector.broadcast %cst_7 : f32 to vector<8x128xf32>
    %10 = arith.maximumf %8, %9 : vector<8x128xf32>
    %11 = arith.truncf %10 : vector<8x128xf32> to vector<8x128xbf16>
    %c1 = arith.constant 1 : index
    %c0_8 = arith.constant 0 : index
    %c0_9 = arith.constant 0 : index
    %12 = vector.load %arg2[%c1, %c0_8, %c0_9] : memref<3x128x128xbf16, #tpu.memory_space<vmem>>, vector<1x128x128xbf16>
    %13 = vector.shape_cast %12 : vector<1x128x128xbf16> to vector<128x128xbf16>
    %cst_10 = arith.constant dense<0.000000e+00> : vector<8x128xf32>
    %14 = tpu.matmul %11, %13, %cst_10 {dimension_numbers = #tpu.dot_dimension_numbers<[1], [0], [0], [1], [0, 0, 1, 1], [], []>} : vector<8x128xbf16>, vector<128x128xbf16>, vector<8x128xf32> -> vector<8x128xf32>
    %c1_11 = arith.constant 1 : index
    %c0_12 = arith.constant 0 : index
    %c0_13 = arith.constant 0 : index
    %15 = vector.load %arg3[%c1_11, %c0_12, %c0_13] : memref<3x1x128xf32, #tpu.memory_space<vmem>>, vector<1x1x128xf32>
    %16 = vector.shape_cast %15 : vector<1x1x128xf32> to vector<1x128xf32>
    %17 = vector.broadcast %16 : vector<1x128xf32> to vector<8x128xf32>
    %18 = arith.addf %14, %17 : vector<8x128xf32>
    %cst_14 = arith.constant 0.000000e+00 : f32
    %19 = vector.broadcast %cst_14 : f32 to vector<8x128xf32>
    %20 = arith.maximumf %18, %19 : vector<8x128xf32>
    %21 = arith.truncf %20 : vector<8x128xf32> to vector<8x128xbf16>
    %c2 = arith.constant 2 : index
    %c0_15 = arith.constant 0 : index
    %c0_16 = arith.constant 0 : index
    %22 = vector.load %arg2[%c2, %c0_15, %c0_16] : memref<3x128x128xbf16, #tpu.memory_space<vmem>>, vector<1x128x128xbf16>
    %23 = vector.shape_cast %22 : vector<1x128x128xbf16> to vector<128x128xbf16>
    %cst_17 = arith.constant dense<0.000000e+00> : vector<8x128xf32>
    %24 = tpu.matmul %21, %23, %cst_17 {dimension_numbers = #tpu.dot_dimension_numbers<[1], [0], [0], [1], [0, 0, 1, 1], [], []>} : vector<8x128xbf16>, vector<128x128xbf16>, vector<8x128xf32> -> vector<8x128xf32>
    %c2_18 = arith.constant 2 : index
    %c0_19 = arith.constant 0 : index
    %c0_20 = arith.constant 0 : index
    %25 = vector.load %arg3[%c2_18, %c0_19, %c0_20] : memref<3x1x128xf32, #tpu.memory_space<vmem>>, vector<1x1x128xf32>
    %26 = vector.shape_cast %25 : vector<1x1x128xf32> to vector<1x128xf32>
    %27 = vector.broadcast %26 : vector<1x128xf32> to vector<8x128xf32>
    %28 = arith.addf %24, %27 : vector<8x128xf32>
    %29 = vector.extract_strided_slice %28 {offsets = [0, 0], sizes = [8, 16], strides = [1, 1]} : vector<8x128xf32> to vector<8x16xf32>
    %c0_21 = arith.constant 0 : index
    %c0_22 = arith.constant 0 : index
    %30 = vector.load %arg4[%c0_21, %c0_22] : memref<8x16xf32, #tpu.memory_space<vmem>>, vector<8x16xf32>
    tpu.vector_store %arg4[%c0_21, %c0_22], %29 {strides = array<i32>} : memref<8x16xf32, #tpu.memory_space<vmem>>, vector<8x16xf32>,
    return
  }
  func.func @transform_0(%arg0: i32) -> (i32, i32) {
    %c0_i32 = arith.constant 0 : i32
    %c0_i32_0 = arith.constant 0 : i32
    return %arg0, %c0_i32 : i32, i32
  }
  func.func @transform_1(%arg0: i32) -> (i32, i32, i32) {
    %c0_i32 = arith.constant 0 : i32
    %c0_i32_0 = arith.constant 0 : i32
    %c0_i32_1 = arith.constant 0 : i32
    %c0_i32_2 = arith.constant 0 : i32
    return %c0_i32, %c0_i32_0, %c0_i32_1 : i32, i32, i32
  }
  func.func @transform_2(%arg0: i32) -> (i32, i32, i32) {
    %c0_i32 = arith.constant 0 : i32
    %c0_i32_0 = arith.constant 0 : i32
    %c0_i32_1 = arith.constant 0 : i32
    %c0_i32_2 = arith.constant 0 : i32
    return %c0_i32, %c0_i32_0, %c0_i32_1 : i32, i32, i32
  }
  func.func @transform_3(%arg0: i32) -> (i32, i32) {
    %c0_i32 = arith.constant 0 : i32
    %c0_i32_0 = arith.constant 0 : i32
    return %arg0, %c0_i32 : i32, i32
  }
}

</mosaic_0001>

<llo_original>
// kernel: _cwm_forward_impl.1
$region0: #{_cwm_forward_impl.1}
  #allocation0 [shape = 'u32[]', space=smem, size = 0x4, offset = 0x4, fixed_abs, tag = 'smem constant byte address 0x4 - core index']
  #allocation1 [shape = 'u32[144,128]{1,0:T(1,128)}', space=vmem, size = 0x12000, scoped, tag = 'internal scratch']
  %s0 = inlined_call_operand.vmem [shape: bf16[8,32], index: 0, kind: input, shape index: {}]
  %s1 = inlined_call_operand.hbm [shape: bf16[3,128,128], index: 1, kind: input, shape index: {}]
  %s2 = inlined_call_operand.vmem [shape: f32[3,1,128], index: 2, kind: input, shape index: {}]
  %s3 = inlined_call_operand.hbm [shape: f32[8,16], index: 3, kind: output, shape index: {}]
  %s4 = sld [smem:[#allocation0]]
  $region26: #{_cwm_forward_impl.1} parent=0
    _
  %s6 = ssub.s32 1, %s4
  %s7 = scalar_select 0, %s6, %s4
  $region1: #{_cwm_forward_impl.1} parent=0
    #allocation2 [shape = 'u8[98304]{0}', space=vmem, size = 0x18000, scoped, tag = 'input window, operand 1, single buffered']
    #allocation3 [shape = 's32[1]{0}', space=sflag, size = 0x4, scoped, tag = 'scoped memory for _cwm_forward_impl.1']
    #allocation4 [shape = 's32[1]{0}', space=sflag, size = 0x4, scoped, tag = 'scoped memory for _cwm_forward_impl.1']
    #allocation5 [shape = 'u8[4096]{0}', space=vmem, size = 0x1000, scoped, tag = 'output window, operand 0, single buffered']
    %8 = vsyncpa [#allocation3], 0
    %9 = vsyncpa [#allocation4], 0
    // Predicated region
    $region2: #{_cwm_forward_impl.1} parent=1 // pred_check
      _
    $region3: #{_cwm_forward_impl.1} parent=1 // pred_check_branch
      %11 = sbr.rel (0) target = $region5
    $region4: #{_cwm_forward_impl.1} parent=1 // pred_region
      _
    $region5: #{_cwm_forward_impl.1} parent=1 // pred_fallthru
      _
    // Predicated region
    $region6: #{_cwm_forward_impl.1} parent=1 // pred_check
      _
    $region7: #{_cwm_forward_impl.1} parent=1 // pred_check_branch
      %13 = sbr.rel (0) target = $region9
    $region8: #{_cwm_forward_impl.1} parent=1 // pred_region
      %s15 = ssub.s32 3072, 3072
      %16 = vsyncadd [#allocation3], %s15
      %s17 = sshll.u32 [#allocation2], 4
      %s18 = int_to_ptr.vmem [resolvable:$true] %s17
      %23 = dma.hbm_to_vmem [thread:$0]  %s1, 3072, %s18, [#allocation3], 64, 64, 4
    $region9: #{_cwm_forward_impl.1} parent=1 // pred_fallthru
      _
    // Predicated region
    $region10: #{_cwm_forward_impl.1} parent=1 // pred_check
      _
    $region11: #{_cwm_forward_impl.1} parent=1 // pred_check_branch
      %25 = sbr.rel (0) target = $region13
    $region12: #{_cwm_forward_impl.1} parent=1 // pred_region
      _
    $region13: #{_cwm_forward_impl.1} parent=1 // pred_fallthru
      _
    // Predicated region
    $region14: #{_cwm_forward_impl.1} parent=1 // pred_check
      _
    $region15: #{_cwm_forward_impl.1} parent=1 // pred_check_branch
      %27 = sbr.rel (0) target = $region17
    $region16: #{_cwm_forward_impl.1} parent=1 // pred_region
      %28 = dma.done [#allocation3], 3072
    $region17: #{_cwm_forward_impl.1} parent=1 // pred_fallthru
      _
    %v30 = vld [vmem:[%s0] sm:$0xf]
    %v31 = vld [vmem:[#allocation2] sm:$0xf]
    %v32 = vld [vmem:[#allocation2 + $0x4] sm:$0xf]
    %v33 = vld [vmem:[#allocation2 + $0x8] sm:$0xf]
    %v34 = vld [vmem:[#allocation2 + $0xc] sm:$0xf]
    %v35 = vld [vmem:[%s2] sm:$0x1]
    %v37 = vlaneseq
    %v38 = vshrl.u32 %v37, 7
    %v39 = vsub.s32 0, %v38
    %v40 = vrot.slane %v35, %v39
    %v46 = vunpack.c.l.b16 %v31
    %v47 = vunpack.c.l.b16 %v32
    %v48 = vunpack.c.l.b16 %v33
    %v49 = vunpack.c.l.b16 %v34
    %v50 = vpack.c.b16 %v47, %v46
    %v51 = vpack.c.b16 %v49, %v48
    %vm54 = vcmask 261120
    %v56 = vsel %vm54, %v30, 0
    %58 = vmatprep.subr.bf16.mxu0 0
    %59 = vmatpush1.bf16.msra.mxu0 0
    %60 = vmatprep.subr.bf16.mxu0 0
    %61 = vmatpush1.bf16.msra.mxu0 0
    %62 = vmatprep.subr.bf16.mxu0 0
    %63 = vmatpush1.bf16.msra.mxu0 0
    %64 = vmatprep.subr.bf16.mxu0 0
    %65 = vmatpush1.bf16.msra.mxu0 0
    %66 = vmatprep.subr.bf16.mxu0 0
    %67 = vmatpush1.bf16.msra.mxu0 0
    %68 = vmatprep.subr.bf16.mxu0 0
    %69 = vmatpush1.bf16.msra.mxu0 0
    %70 = vmatprep.subr.bf16.mxu0 0
    %71 = vmatpush1.bf16.msra.mxu0 %v51
    %72 = vmatprep.subr.bf16.mxu0 0
    %73 = vmatpush1.bf16.msra.mxu0 %v50
    %74 = vmatprep.subr.bf16.mxu0 0
    %75 = vmatpush2.bf16.msra.mxu0 0
    %76 = vmatprep.subr.bf16.mxu0 0
    %77 = vmatpush2.bf16.msra.mxu0 0
    %78 = vmatprep.subr.bf16.mxu0 0
    %79 = vmatpush2.bf16.msra.mxu0 0
    %80 = vmatprep.subr.bf16.mxu0 0
    %81 = vmatpush2.bf16.msra.mxu0 0
    %82 = vmatprep.subr.bf16.mxu0 0
    %83 = vmatpush2.bf16.msra.mxu0 0
    %84 = vmatprep.subr.bf16.mxu0 0
    %85 = vmatpush2.bf16.msra.mxu0 0
    %86 = vmatprep.subr.bf16.mxu0 0
    %87 = vmatpush2.bf16.msra.mxu0 0
    %88 = vmatprep.subr.bf16.mxu0 0
    %89 = vmatpush2.bf16.msra.mxu0 0
    %90 = vmatprep.mubr.bf16.mxu0 0
    %91 = vmatmul.mubr.bf16.gmra.mxu0 %v56
    %v92 = vpop.f32.mrf.mxu0
    %v93 = vadd.f32 %v40, %v92
    %v94 = vpop.f32.mrf.mxu0
    %v95 = vpop.f32.mrf.mxu0
    %v96 = vpop.f32.mrf.mxu0
    %97 = vdwg.mxu0
    %v98 = vmax.f32 %v93, 0.0
    %v99 = vpack.c.bf16 %v98, %v98
    %s100 = scalar_lea.vmem [#allocation2], 64
    %v101 = vld [vmem:[%s100] sm:$0xf]
    %v102 = vld [vmem:[%s100 + $0x4] sm:$0xf]
    %v103 = vld [vmem:[%s100 + $0x8] sm:$0xf]
    %v104 = vld [vmem:[%s100 + $0xc] sm:$0xf]
    %v105 = vld [vmem:[%s100 + $0x10] sm:$0xf]
    %v106 = vld [vmem:[%s100 + $0x14] sm:$0xf]
    %v107 = vld [vmem:[%s100 + $0x18] sm:$0xf]
    %v108 = vld [vmem:[%s100 + $0x1c] sm:$0xf]
    %v109 = vld [vmem:[%s100 + $0x20] sm:$0xf]
    %v110 = vld [vmem:[%s100 + $0x24] sm:$0xf]
    %v111 = vld [vmem:[%s100 + $0x28] sm:$0xf]
    %v112 = vld [vmem:[%s100 + $0x2c] sm:$0xf]
    %v113 = vld [vmem:[%s100 + $0x30] sm:$0xf]
    %v114 = vld [vmem:[%s100 + $0x34] sm:$0xf]
    %v115 = vld [vmem:[%s100 + $0x38] sm:$0xf]
    %v116 = vld [vmem:[%s100 + $0x3c] sm:$0xf]
    %s117 = scalar_lea.vmem %s2, 1
    %v118 = vld [vmem:[%s117] sm:$0x1]
    %v120 = vlaneseq
    %v121 = vshrl.u32 %v120, 7
    %v122 = vsub.s32 0, %v121
    %v123 = vrot.slane %v118, %v122
    %v141 = vunpack.c.l.b16 %v101
    %v142 = vunpack.c.l.b16 %v102
    %v143 = vunpack.c.l.b16 %v103
    %v144 = vunpack.c.l.b16 %v104
    %v145 = vunpack.c.l.b16 %v105
    %v146 = vunpack.c.l.b16 %v106
    %v147 = vunpack.c.l.b16 %v107
    %v148 = vunpack.c.l.b16 %v108
    %v149 = vunpack.c.l.b16 %v109
    %v150 = vunpack.c.l.b16 %v110
    %v151 = vunpack.c.l.b16 %v111
    %v152 = vunpack.c.l.b16 %v112
    %v153 = vunpack.c.l.b16 %v113
    %v154 = vunpack.c.l.b16 %v114
    %v155 = vunpack.c.l.b16 %v115
    %v156 = vunpack.c.l.b16 %v116
    %v157 = vpack.c.b16 %v142, %v141
    %v158 = vpack.c.b16 %v144, %v143
    %v159 = vpack.c.b16 %v146, %v145
    %v160 = vpack.c.b16 %v148, %v147
    %v161 = vpack.c.b16 %v150, %v149
    %v162 = vpack.c.b16 %v152, %v151
    %v163 = vpack.c.b16 %v154, %v153
    %v164 = vpack.c.b16 %v156, %v155
    %173 = vmatprep.subr.bf16.mxu0 0
    %174 = vmatpush1.bf16.msra.mxu0 %v164
    %175 = vmatprep.subr.bf16.mxu0 0
    %176 = vmatpush1.bf16.msra.mxu0 %v163
    %177 = vmatprep.subr.bf16.mxu0 0
    %178 = vmatpush1.bf16.msra.mxu0 %v162
    %179 = vmatprep.subr.bf16.mxu0 0
    %180 = vmatpush1.bf16.msra.mxu0 %v161
    %181 = vmatprep.subr.bf16.mxu0 0
    %182 = vmatpush1.bf16.msra.mxu0 %v160
    %183 = vmatprep.subr.bf16.mxu0 0
    %184 = vmatpush1.bf16.msra.mxu0 %v159
    %185 = vmatprep.subr.bf16.mxu0 0
    %186 = vmatpush1.bf16.msra.mxu0 %v158
    %187 = vmatprep.subr.bf16.mxu0 0
    %188 = vmatpush1.bf16.msra.mxu0 %v157
    %189 = vmatprep.subr.bf16.mxu0 0
    %190 = vmatpush2.bf16.msra.mxu0 0
    %191 = vmatprep.subr.bf16.mxu0 0
    %192 = vmatpush2.bf16.msra.mxu0 0
    %193 = vmatprep.subr.bf16.mxu0 0
    %194 = vmatpush2.bf16.msra.mxu0 0
    %195 = vmatprep.subr.bf16.mxu0 0
    %196 = vmatpush2.bf16.msra.mxu0 0
    %197 = vmatprep.subr.bf16.mxu0 0
    %198 = vmatpush2.bf16.msra.mxu0 0
    %199 = vmatprep.subr.bf16.mxu0 0
    %200 = vmatpush2.bf16.msra.mxu0 0
    %201 = vmatprep.subr.bf16.mxu0 0
    %202 = vmatpush2.bf16.msra.mxu0 0
    %203 = vmatprep.subr.bf16.mxu0 0
    %204 = vmatpush2.bf16.msra.mxu0 0
    %205 = vmatprep.mubr.bf16.mxu0 0
    %206 = vmatmul.mubr.bf16.gmra.mxu0 %v99
    %v207 = vpop.f32.mrf.mxu0
    %v208 = vadd.f32 %v123, %v207
    %v209 = vpop.f32.mrf.mxu0
    %v210 = vpop.f32.mrf.mxu0
    %v211 = vpop.f32.mrf.mxu0
    %212 = vdwg.mxu0
    %v213 = vmax.f32 %v208, 0.0
    %v214 = vpack.c.bf16 %v213, %v213
    %s215 = scalar_lea.vmem [#allocation2], 128
    %v216 = vld [vmem:[%s215] sm:$0xf]
    %v217 = vld [vmem:[%s215 + $0x4] sm:$0xf]
    %v218 = vld [vmem:[%s215 + $0x8] sm:$0xf]
    %v219 = vld [vmem:[%s215 + $0xc] sm:$0xf]
    %v220 = vld [vmem:[%s215 + $0x10] sm:$0xf]
    %v221 = vld [vmem:[%s215 + $0x14] sm:$0xf]
    %v222 = vld [vmem:[%s215 + $0x18] sm:$0xf]
    %v223 = vld [vmem:[%s215 + $0x1c] sm:$0xf]
    %v224 = vld [vmem:[%s215 + $0x20] sm:$0xf]
    %v225 = vld [vmem:[%s215 + $0x24] sm:$0xf]
    %v226 = vld [vmem:[%s215 + $0x28] sm:$0xf]
    %v227 = vld [vmem:[%s215 + $0x2c] sm:$0xf]
    %v228 = vld [vmem:[%s215 + $0x30] sm:$0xf]
    %v229 = vld [vmem:[%s215 + $0x34] sm:$0xf]
    %v230 = vld [vmem:[%s215 + $0x38] sm:$0xf]
    %v231 = vld [vmem:[%s215 + $0x3c] sm:$0xf]
    %s232 = scalar_lea.vmem %s2, 2
    %v233 = vld [vmem:[%s232] sm:$0x1]
    %v235 = vlaneseq
    %v236 = vshrl.u32 %v235, 7
    %v237 = vsub.s32 0, %v236
    %v238 = vrot.slane %v233, %v237
    %v256 = vunpack.c.l.b16 %v216
    %v257 = vunpack.c.l.b16 %v217
    %v258 = vunpack.c.l.b16 %v218
    %v259 = vunpack.c.l.b16 %v219
    %v260 = vunpack.c.l.b16 %v220
    %v261 = vunpack.c.l.b16 %v221
    %v262 = vunpack.c.l.b16 %v222
    %v263 = vunpack.c.l.b16 %v223
    %v264 = vunpack.c.l.b16 %v224
    %v265 = vunpack.c.l.b16 %v225
    %v266 = vunpack.c.l.b16 %v226
    %v267 = vunpack.c.l.b16 %v227
    %v268 = vunpack.c.l.b16 %v228
    %v269 = vunpack.c.l.b16 %v229
    %v270 = vunpack.c.l.b16 %v230
    %v271 = vunpack.c.l.b16 %v231
    %v272 = vpack.c.b16 %v257, %v256
    %v273 = vpack.c.b16 %v259, %v258
    %v274 = vpack.c.b16 %v261, %v260
    %v275 = vpack.c.b16 %v263, %v262
    %v276 = vpack.c.b16 %v265, %v264
    %v277 = vpack.c.b16 %v267, %v266
    %v278 = vpack.c.b16 %v269, %v268
    %v279 = vpack.c.b16 %v271, %v270
    %288 = vmatprep.subr.bf16.mxu0 0
    %289 = vmatpush1.bf16.msra.mxu0 %v279
    %290 = vmatprep.subr.bf16.mxu0 0
    %291 = vmatpush1.bf16.msra.mxu0 %v278
    %292 = vmatprep.subr.bf16.mxu0 0
    %293 = vmatpush1.bf16.msra.mxu0 %v277
    %294 = vmatprep.subr.bf16.mxu0 0
    %295 = vmatpush1.bf16.msra.mxu0 %v276
    %296 = vmatprep.subr.bf16.mxu0 0
    %297 = vmatpush1.bf16.msra.mxu0 %v275
    %298 = vmatprep.subr.bf16.mxu0 0
    %299 = vmatpush1.bf16.msra.mxu0 %v274
    %300 = vmatprep.subr.bf16.mxu0 0
    %301 = vmatpush1.bf16.msra.mxu0 %v273
    %302 = vmatprep.subr.bf16.mxu0 0
    %303 = vmatpush1.bf16.msra.mxu0 %v272
    %304 = vmatprep.subr.bf16.mxu0 0
    %305 = vmatpush2.bf16.msra.mxu0 0
    %306 = vmatprep.subr.bf16.mxu0 0
    %307 = vmatpush2.bf16.msra.mxu0 0
    %308 = vmatprep.subr.bf16.mxu0 0
    %309 = vmatpush2.bf16.msra.mxu0 0
    %310 = vmatprep.subr.bf16.mxu0 0
    %311 = vmatpush2.bf16.msra.mxu0 0
    %312 = vmatprep.subr.bf16.mxu0 0
    %313 = vmatpush2.bf16.msra.mxu0 0
    %314 = vmatprep.subr.bf16.mxu0 0
    %315 = vmatpush2.bf16.msra.mxu0 0
    %316 = vmatprep.subr.bf16.mxu0 0
    %317 = vmatpush2.bf16.msra.mxu0 0
    %318 = vmatprep.subr.bf16.mxu0 0
    %319 = vmatpush2.bf16.msra.mxu0 0
    %320 = vmatprep.mubr.bf16.mxu0 0
    %321 = vmatmul.mubr.bf16.gmra.mxu0 %v214
    %v322 = vpop.f32.mrf.mxu0
    %v323 = vadd.f32 %v238, %v322
    %v324 = vpop.f32.mrf.mxu0
    %v325 = vpop.f32.mrf.mxu0
    %v326 = vpop.f32.mrf.mxu0
    %327 = vdwg.mxu0
    %vm328 = vcmask 130048
    %329 = vst.msk [vmem:[#allocation5] sm:$0xff] %vm328, %v323
    // Predicated region
    $region18: #{_cwm_forward_impl.1} parent=1 // pred_check
      _
    $region19: #{_cwm_forward_impl.1} parent=1 // pred_check_branch
      %331 = sbr.rel (0) target = $region21
    $region20: #{_cwm_forward_impl.1} parent=1 // pred_region
      %s333 = ssub.s32 128, 128
      %334 = vsyncadd [#allocation4], %s333
      %s336 = sshll.u32 [#allocation5], 4
      %s337 = int_to_ptr.vmem [resolvable:$true] %s336
      %339 = dma.vmem_to_hbm [thread:$0]  %s337, 128, %s3, [#allocation4]
    $region21: #{_cwm_forward_impl.1} parent=1 // pred_fallthru
      _
    // Predicated region
    $region22: #{_cwm_forward_impl.1} parent=1 // pred_check
      _
    $region23: #{_cwm_forward_impl.1} parent=1 // pred_check_branch
      %341 = sbr.rel (0) target = $region25
    $region24: #{_cwm_forward_impl.1} parent=1 // pred_region
      %342 = dma.done [#allocation4], 128
    $region25: #{_cwm_forward_impl.1} parent=1 // pred_fallthru
      _
    %343 = vsyncpa [#allocation3], 1
    %344 = vsyncpa [#allocation4], 1

</llo_original>
